<compile_context>
chip_gen: v6e
topology: v6e:2x2x1
jax: 0.10.0
libtpu: 0.0.40
codegen_flags: <defaults>
</compile_context>

<pallas_src>
import jax
import jax.numpy as jnp
from jax.experimental import pallas as pl
from jax.experimental.pallas import tpu as pltpu


# ----------------------------- Pallas kernels --------------------------------
def _make_gap_kernel(hw):
    """Global-average-pool over HW, tiled; f32 accumulate, *(1/HW) finalize."""

    def _gap_kernel(xl_ref, sum_ref):
        # xl_ref:  (1, Co, RT) input dtype
        # sum_ref: (1, Co, 1)  f32, resident across the HW grid axis
        t = pl.program_id(1)

        @pl.when(t == 0)
        def _():
            sum_ref[...] = jnp.zeros_like(sum_ref)

        x = xl_ref[0]                                   # (Co, RT)
        rt = x.shape[-1]
        if hw % rt != 0:
            # Ragged last tile: zero out the padded lanes before reducing.
            col = jax.lax.broadcasted_iota(jnp.int32, x.shape, 1)
            x = jnp.where(col < (hw - t * rt), x, jnp.zeros_like(x))
        # f32 accumulation without materializing a full f32 copy of the tile.
        sum_ref[0] += jnp.sum(x, axis=-1, keepdims=True, dtype=jnp.float32)

        @pl.when(t == pl.num_programs(1) - 1)
        def _():
            sum_ref[...] = sum_ref[...] * (1.0 / hw)

    return _gap_kernel


def _fuse_kernel(xh_ref, xl_ref, gate_ref, wh_ref, bh_ref, out_ref):
    """Per (batch-block, HW-tile): out = gate * relu(Wh @ xh + bh) + xl.

    xh_ref:   (Nb, Ch, RT) input dtype (f32 here)
    xl_ref:   (Nb, Co, RT) input dtype
    gate_ref: (Nb, Co, 1)  f32
    wh_ref:   (Co, Ch)     bf16 (MXU operand)
    bh_ref:   (Co, 1)      f32
    out_ref:  (Nb, Co, RT) bf16 — RT is a multiple of 128 (or full HW):
              lane-dense unmasked stores.
    """
    w = wh_ref[...]                                     # (Co, Ch) bf16
    b = bh_ref[...]                                     # (Co, 1)  f32
    for i in range(xh_ref.shape[0]):                    # static unroll, Nb small
        xh_bf = xh_ref[i].astype(jnp.bfloat16)          # bf16 MXU operand
        feat = jnp.maximum(
            jnp.dot(w, xh_bf, preferred_element_type=jnp.float32) + b, 0.0)
        # Residual add streamed straight from the ref (no named f32 temp).
        out_ref[i] = (gate_ref[i] * feat + xl_ref[i]).astype(out_ref.dtype)


# ------------------------------- wrapper --------------------------------------
def bottom_up_global_fuse(xh_nchw, xl_nchw, wh, bh, w1, b1, w2, b2,
                          row_tile=2048, gap_row_tile=4096,
                          out_dtype=jnp.bfloat16):
    """xh: (N, Ch, H, W), xl: (N, Co, H, W) -> (N, Co, H, W) in out_dtype.

    Weights are BN-folded 1x1 convs in (Cout, Cin) orientation; biases (Cout, 1).
    """
    N, Ch, H, W = xh_nchw.shape
    Co = xl_nchw.shape[1]
    HW = H * W

    # NCHW -> (N, C, HW) is a free contiguous-merge view; NO dtype cast here
    # (an extra cast pass would double the HBM traffic of a mem-bound kernel).
    xh_f = xh_nchw.reshape(N, Ch, HW)
    xl_f = xl_nchw.reshape(N, Co, HW)

    # ---- gating branch: Pallas GAP (tiled, f32 accum) + XLA MLP + sigmoid ---
    rt_g = HW if HW <= gap_row_tile else gap_row_tile       # mult of 128 or full
    n_gt = pl.cdiv(HW, rt_g)
    pooled = pl.pallas_call(
        _make_gap_kernel(HW),
        out_shape=jax.ShapeDtypeStruct((N, Co, 1), jnp.float32),
        grid_spec=pltpu.PrefetchScalarGridSpec(
            num_scalar_prefetch=0,
            grid=(N, n_gt),
            in_specs=[pl.BlockSpec((1, Co, rt_g), lambda n, t: (n, 0, t))],
            out_specs=pl.BlockSpec((1, Co, 1), lambda n, t: (n, 0, 0)),
        ),
        compiler_params=pltpu.CompilerParams(
            dimension_semantics=("parallel", "arbitrary")),
    )(xl_f)

    # Tiny 2-layer MLP + sigmoid on the pooled (N, Co) tensor: plain XLA.
    z = jax.nn.relu(pooled[:, :, 0] @ w1.T + b1[:, 0])        # (N, Cb)
    g = jax.nn.sigmoid(z @ w2.T + b2[:, 0])                   # (N, Co)
    gate = g[:, :, None].astype(jnp.float32)                  # (N, Co, 1)

    # ---- fused gate * relu(conv1x1(xh)) + xl, tiled over (batch, HW) --------
    rt = HW if HW <= row_tile else row_tile                   # lane-dense tile
    n_t = pl.cdiv(HW, rt)                                     # ragged tail OK

    # Fold batch elements into one block when a single tile already covers HW,
    # to amortize the per-step overhead; keep >= 2 grid points when N >= 2 so
    # both v7x TensorCores get work.
    nb = 1
    if n_t == 1 and N > 1:
        itemsize = jnp.dtype(xh_f.dtype).itemsize
        per_batch_bytes = (Ch * itemsize + Co * itemsize
                           + Co * jnp.dtype(out_dtype).itemsize) * HW
        nb = max(1, min(N, (256 * 1024) // max(per_batch_bytes, 1)))
        nb = min(nb, max(1, N // 2))
    n_b = pl.cdiv(N, nb)

    wh_bf = wh.astype(jnp.bfloat16)        # MXU weight operand (cast once)
    bh_f32 = bh.astype(jnp.float32)        # f32 epilogue bias

    out = pl.pallas_call(
        _fuse_kernel,
        out_shape=jax.ShapeDtypeStruct((N, Co, HW), out_dtype),
        grid_spec=pltpu.PrefetchScalarGridSpec(
            num_scalar_prefetch=0,
            grid=(n_b, n_t),
            in_specs=[
                pl.BlockSpec((nb, Ch, rt), lambda b, t: (b, 0, t)),
                pl.BlockSpec((nb, Co, rt), lambda b, t: (b, 0, t)),
                pl.BlockSpec((nb, Co, 1), lambda b, t: (b, 0, 0)),
                pl.BlockSpec((Co, Ch), lambda b, t: (0, 0)),
                pl.BlockSpec((Co, 1), lambda b, t: (0, 0)),
            ],
            out_specs=pl.BlockSpec((nb, Co, rt), lambda b, t: (b, 0, t)),
        ),
        compiler_params=pltpu.CompilerParams(
            dimension_semantics=("parallel", "parallel")),
    )(xh_f, xl_f, gate, wh_bf, bh_f32)

    return out.reshape(N, Co, H, W)


# ------------------------ parameter setup (glue) -----------------------------
def fold_bn(w_oc_ic, b_oc, gamma, beta, mean, var, eps=1e-5):
    """Fold eval-mode BN into a 1x1 conv. w: (Cout, Cin). Returns
    (W_eff: (Cout, Cin), b_eff: (Cout, 1)) s.t. conv+BN == W_eff @ x + b_eff."""
    inv = gamma / jnp.sqrt(var + eps)
    w_eff = w_oc_ic * inv[:, None]
    b_eff = ((b_oc - mean) * inv + beta)[:, None]
    return w_eff.astype(jnp.float32), b_eff.astype(jnp.float32)


def make_params(key, ch_high, ch_low, ch_out, r=4):
    cb = ch_out // r
    ks = jax.random.split(key, 6)

    def bn_params(c):
        i = jnp.arange(c, dtype=jnp.float32)
        gamma = 1.0 + 0.1 * jnp.cos(i)
        beta = 0.05 * jnp.sin(i)
        mean = 0.02 * i
        var = 1.0 + 0.01 * i
        return gamma, beta, mean, var

    return dict(
        wh=0.3 * jax.random.normal(ks[0], (ch_out, ch_high), jnp.float32),
        bh=0.1 * jax.random.normal(ks[1], (ch_out,), jnp.float32),
        bn_h=bn_params(ch_out),
        w1=0.3 * jax.random.normal(ks[2], (cb, ch_low), jnp.float32),
        b1=0.1 * jax.random.normal(ks[3], (cb,), jnp.float32),
        bn1=bn_params(cb),
        w2=0.3 * jax.random.normal(ks[4], (ch_out, cb), jnp.float32),
        b2=0.1 * jax.random.normal(ks[5], (ch_out,), jnp.float32),
        bn2=bn_params(ch_out),
    )


# --------------------------- pure-JAX reference ------------------------------
def reference_nchw(xh, xl, p, eps=1e-5):
    def conv1x1(x, w, b):
        return jnp.einsum('nchw,oc->nohw', x, w) + b[None, :, None, None]

    def bn(x, stats):
        gamma, beta, mean, var = stats
        inv = gamma / jnp.sqrt(var + eps)
        return x * inv[None, :, None, None] + (beta - mean * inv)[None, :, None, None]

    xh_f = jax.nn.relu(bn(conv1x1(xh, p['wh'], p['bh']), p['bn_h']))
    pooled = jnp.mean(xl, axis=(2, 3), keepdims=True)
    z = jax.nn.relu(bn(conv1x1(pooled, p['w1'], p['b1']), p['bn1']))
    w = jax.nn.sigmoid(bn(conv1x1(z, p['w2'], p['b2']), p['bn2']))
    return w * xh_f + xl


# ---------------------------------- main -------------------------------------
if __name__ == "__main__":
    N, Ch, Cl, H, W = 2, 8, 16, 16, 16          # in_low_channels == out_channels
    Co, r = Cl, 4

    key = jax.random.PRNGKey(0)
    k_xh, k_xl, k_p = jax.random.split(key, 3)
    xh = jax.random.normal(k_xh, (N, Ch, H, W), jnp.float32)   # NCHW like PyTorch
    xl = jax.random.normal(k_xl, (N, Cl, H, W), jnp.float32)

    params = make_params(k_p, Ch, Cl, Co, r)

    # Fold eval-mode BN into the three 1x1 convs (kept in (Cout, Cin) form).
    wh_eff, bh_eff = fold_bn(params['wh'], params['bh'], *params['bn_h'])
    w1_eff, b1_eff = fold_bn(params['w1'], params['b1'], *params['bn1'])
    w2_eff, b2_eff = fold_bn(params['w2'], params['b2'], *params['bn2'])

    out = bottom_up_global_fuse(
        xh, xl, wh_eff, bh_eff, w1_eff, b1_eff, w2_eff, b2_eff)
    out = jax.block_until_ready(out)

    # Reference is pure f32 math. Kernel differences: the high-branch conv uses
    # bf16 weights/activations (f32 accumulation) and the output is bf16, so
    # the tolerance covers ~2 bf16 roundings on O(1) values.
    ref = reference_nchw(xh, xl, params)
    err = float(jnp.max(jnp.abs(out.astype(jnp.float32) - ref)))
    assert err < 7.5e-2, f"mismatch vs reference: {err}"

    print("KERNEL_OK")
</pallas_src>

<mosaic_0001>
module attributes {stable_mosaic.version = 11 : i64} {
  func.func @_gap_kernel(%arg0: i32, %arg1: i32, %arg2: memref<1x16x256xf32, #tpu.memory_space<vmem>>, %arg3: memref<1x16x1xf32, #tpu.memory_space<vmem>>) attributes {dimension_semantics = [#tpu.dimension_semantics<parallel>, #tpu.dimension_semantics<arbitrary>], iteration_bounds = array<i64: 2, 1>, scalar_prefetch = 0 : i64, scratch_operands = 0 : i64, tpu.core_type = #tpu.core_type<tc>, window_params = [{transform_indices = @transform_0, window_bounds = array<i64: 1, 16, 256>}, {transform_indices = @transform_1, window_bounds = array<i64: 1, 16, 1>}]} {
    %c0_i32 = arith.constant 0 : i32
    %0 = arith.cmpi eq, %arg1, %c0_i32 : i32
    %1 = arith.extui %0 : i1 to i32
    %c0_i32_0 = arith.constant 0 : i32
    %2 = arith.cmpi ne, %1, %c0_i32_0 : i32
    scf.if %2 {
      %cst_11 = arith.constant 0.000000e+00 : f32
      %16 = vector.broadcast %cst_11 : f32 to vector<1x16x1xf32>
      %c0_12 = arith.constant 0 : index
      %c0_13 = arith.constant 0 : index
      %c0_14 = arith.constant 0 : index
      %17 = vector.load %arg3[%c0_12, %c0_13, %c0_14] : memref<1x16x1xf32, #tpu.memory_space<vmem>>, vector<1x16x1xf32>
      tpu.vector_store %arg3[%c0_12, %c0_13, %c0_14], %16 {strides = array<i32>} : memref<1x16x1xf32, #tpu.memory_space<vmem>>, vector<1x16x1xf32>,
    } else {
    }
    %c0 = arith.constant 0 : index
    %c0_1 = arith.constant 0 : index
    %c0_2 = arith.constant 0 : index
    %3 = vector.load %arg2[%c0, %c0_1, %c0_2] : memref<1x16x256xf32, #tpu.memory_space<vmem>>, vector<1x16x256xf32>
    %4 = vector.shape_cast %3 : vector<1x16x256xf32> to vector<16x256xf32>
    %c0_3 = arith.constant 0 : index
    %c0_4 = arith.constant 0 : index
    %c0_5 = arith.constant 0 : index
    %5 = vector.load %arg3[%c0_3, %c0_4, %c0_5] : memref<1x16x1xf32, #tpu.memory_space<vmem>>, vector<1x16x1xf32>
    %6 = vector.shape_cast %5 : vector<1x16x1xf32> to vector<16x1xf32>
    %cst = arith.constant dense<0.000000e+00> : vector<16xf32>
    %7 = vector.multi_reduction <add>, %4, %cst [1] : vector<16x256xf32> to vector<16xf32>
    %8 = vector.shape_cast %7 : vector<16xf32> to vector<16x1xf32>
    %9 = arith.addf %6, %8 : vector<16x1xf32>
    %c0_6 = arith.constant 0 : index
    %c0_7 = arith.constant 0 : index
    %c0_8 = arith.constant 0 : index
    %10 = vector.load %arg3[%c0_6, %c0_7, %c0_8] : memref<1x16x1xf32, #tpu.memory_space<vmem>>, vector<1x16x1xf32>
    %11 = vector.shape_cast %10 : vector<1x16x1xf32> to vector<16x1xf32>
    %12 = vector.shape_cast %9 : vector<16x1xf32> to vector<1x16x1xf32>
    tpu.vector_store %arg3[%c0_6, %c0_7, %c0_8], %12 {strides = array<i32>} : memref<1x16x1xf32, #tpu.memory_space<vmem>>, vector<1x16x1xf32>,
    %c0_i32_9 = arith.constant 0 : i32
    %13 = arith.cmpi eq, %arg1, %c0_i32_9 : i32
    %14 = arith.extui %13 : i1 to i32
    %c0_i32_10 = arith.constant 0 : i32
    %15 = arith.cmpi ne, %14, %c0_i32_10 : i32
    scf.if %15 {
      %c0_11 = arith.constant 0 : index
      %c0_12 = arith.constant 0 : index
      %c0_13 = arith.constant 0 : index
      %16 = vector.load %arg3[%c0_11, %c0_12, %c0_13] : memref<1x16x1xf32, #tpu.memory_space<vmem>>, vector<1x16x1xf32>
      %cst_14 = arith.constant 3.906250e-03 : f32
      %17 = vector.broadcast %cst_14 : f32 to vector<1x16x1xf32>
      %18 = arith.mulf %16, %17 : vector<1x16x1xf32>
      %c0_15 = arith.constant 0 : index
      %c0_16 = arith.constant 0 : index
      %c0_17 = arith.constant 0 : index
      %19 = vector.load %arg3[%c0_15, %c0_16, %c0_17] : memref<1x16x1xf32, #tpu.memory_space<vmem>>, vector<1x16x1xf32>
      tpu.vector_store %arg3[%c0_15, %c0_16, %c0_17], %18 {strides = array<i32>} : memref<1x16x1xf32, #tpu.memory_space<vmem>>, vector<1x16x1xf32>,
    } else {
    }
    return
  }
  func.func @transform_0(%arg0: i32, %arg1: i32) -> (i32, i32, i32) {
    %c0_i32 = arith.constant 0 : i32
    %c0_i32_0 = arith.constant 0 : i32
    return %arg0, %c0_i32, %arg1 : i32, i32, i32
  }
  func.func @transform_1(%arg0: i32, %arg1: i32) -> (i32, i32, i32) {
    %c0_i32 = arith.constant 0 : i32
    %c0_i32_0 = arith.constant 0 : i32
    %c0_i32_1 = arith.constant 0 : i32
    return %arg0, %c0_i32, %c0_i32_0 : i32, i32, i32
  }
}

</mosaic_0001>

<llo_original>
// kernel: tpu_custom_call.1
$region0: #{tpu_custom_call.1}
  #allocation0 [shape = 'u32[]', space=smem, size = 0x4, offset = 0x4, fixed_abs, tag = 'smem constant byte address 0x4 - core index']
  #allocation1 [shape = 'u32[144,128]{1,0:T(1,128)}', space=vmem, size = 0x12000, scoped, tag = 'internal scratch']
  %s0 = inlined_call_operand.hbm [shape: f32[2,16,256], index: 0, kind: input, shape index: {}]
  %s1 = inlined_call_operand.vmem [shape: f32[2,16,1], index: 1, kind: output, shape index: {}]
  %s2 = sld [smem:[#allocation0]]
  $region49: #{tpu_custom_call.1} parent=0
    _
  %s4 = ssub.s32 1, %s2
  %s5 = scalar_select 0, %s4, %s2
  $region1: #{tpu_custom_call.1} parent=0
    #allocation2 [shape = 'u8[32768]{0}', space=vmem, size = 0x8000, scoped, tag = 'input window, operand 0']
    #allocation3 [shape = 's32[2]{0}', space=sflag, size = 0x8, scoped, tag = 'scoped memory for tpu_custom_call.1']
    %6 = vsyncpa [#allocation3], 0
    %s7 = scalar_lea.sflag [#allocation3], 1
    %8 = vsyncpa %s7, 0
    loop: start=0, step=1, limit=4
    $region2: #{tpu_custom_call.1} parent=1 // loop_pre_header
      _
    $region3: #{tpu_custom_call.1} parent=1 // loop_header
      %s10 = sphi 0, %s14
      %p11 = scmp.ge.s32.totalorder %s10, 4
      %s17 = sphi 0, %s29
      %s18 = sphi 0, %s25
      %s19 = sphi 0, %s17
      %s20 = sphi 0, %s18
      %s21 = sphi 0, %s19
      %s22 = sphi 0, %s20
      %s34 = sphi 0, %s36
      %s37 = sphi 0, %s34
      %s38 = sphi 0, %s37
      %s54 = sphi 0, %s38
      %s60 = sphi 0, %s62
      %s63 = sphi 0, %s60
      %s64 = sphi 0, %s63
      %s80 = sphi 0, %s64
    $region4: #{tpu_custom_call.1} parent=1 // loop_header_branch
      %13 = sbr.rel (%p11) target = $region8
    $region5: #{tpu_custom_call.1} parent=1 // loop_body
      %s15 = ssub.s32 %s10, 1
      %s16 = ssub.s32 %s10, 2
      %s23 = sadd.s32 1, %s18
      %p24 = scmp.ge.s32.totalorder %s23, 1
      %s25 = scalar_select %p24, 0, %s23
      %s26 = sadd.s32 1, %s17
      %s27 = scalar_select %p24, %s26, %s17
      %p28 = scmp.ge.s32.totalorder %s27, 2
      %s29 = scalar_select %p28, 0, %s27
      %s30 = ssub.s32 %s17, %s29
      %s31 = ssub.s32 %s18, %s25
      %s32 = sor.u32 %s30, %s31
      %p33 = scmp.eq.s32.totalorder %s32, 0
      %s35 = sadd.s32 %s34, 1
      %s36 = scalar_select %p33, %s34, %s35
      %p39 = pneg %p33
      %p40 = scmp.eq.s32.totalorder %s10, 1
      %p41 = por %p39, %p40
      %p42 = scmp.ne.s32.totalorder %s34, %s37
      %p43 = scmp.eq.s32.totalorder %s10, 0
      %p44 = por %p42, %p43
      %p45 = scmp.ne.s32.totalorder %s34, %s37
      %p46 = scmp.eq.s32.totalorder %s15, 1
      %p47 = por %p45, %p46
      %p48 = scmp.ne.s32.totalorder %s37, %s38
      %p49 = scmp.eq.s32.totalorder %s15, 0
      %p50 = por %p48, %p49
      %p51 = scmp.ne.s32.totalorder %s37, %s38
      %p52 = scmp.eq.s32.totalorder %s16, 1
      %p53 = por %p51, %p52
      %p55 = scmp.ne.s32.totalorder %s38, %s54
      %p56 = scmp.eq.s32.totalorder %s16, 0
      %p57 = por %p55, %p56
      %s58 = ssub.s32 %s17, %s29
      %p59 = scmp.eq.s32.totalorder %s58, 0
      %s61 = sadd.s32 %s60, 1
      %s62 = scalar_select %p59, %s60, %s61
      %p65 = pneg %p59
      %p66 = scmp.eq.s32.totalorder %s10, 1
      %p67 = por %p65, %p66
      %p68 = scmp.ne.s32.totalorder %s60, %s63
      %p69 = scmp.eq.s32.totalorder %s10, 0
      %p70 = por %p68, %p69
      %p71 = scmp.ne.s32.totalorder %s60, %s63
      %p72 = scmp.eq.s32.totalorder %s15, 1
      %p73 = por %p71, %p72
      %p74 = scmp.ne.s32.totalorder %s63, %s64
      %p75 = scmp.eq.s32.totalorder %s15, 0
      %p76 = por %p74, %p75
      %p77 = scmp.ne.s32.totalorder %s63, %s64
      %p78 = scmp.eq.s32.totalorder %s16, 1
      %p79 = por %p77, %p78
      %p81 = scmp.ne.s32.totalorder %s64, %s80
      %p82 = scmp.eq.s32.totalorder %s16, 0
      %p83 = por %p81, %p82
      %p84 = scmp.le.s32.totalorder 1, %s10
      %p85 = scmp.lt.s32.totalorder %s10, 3
      %p86 = pnand %p84, %p85
      %p87 = pneg %p86
      // Predicated region
      $region9: #{tpu_custom_call.1} parent=5 // pred_check
        _
      $region10: #{tpu_custom_call.1} parent=5 // pred_check_branch
        %89 = sbr.rel (%p86) target = $region12
      $region11: #{tpu_custom_call.1} parent=5 // pred_region
        %s90 = ssub.s32 %s10, 1
      $region12: #{tpu_custom_call.1} parent=5 // pred_fallthru
        _
      %p91 = scmp.lt.s32.totalorder %s10, 2
      // Predicated region
      $region13: #{tpu_custom_call.1} parent=5 // pred_check
        %p92 = pneg %p91
      $region14: #{tpu_custom_call.1} parent=5 // pred_check_branch
        %94 = sbr.rel (%p92) target = $region16
      $region15: #{tpu_custom_call.1} parent=5 // pred_region
        // Predicated region
        $region17: #{tpu_custom_call.1} parent=15 // pred_check
          %p95 = pneg %p44
        $region18: #{tpu_custom_call.1} parent=15 // pred_check_branch
          %97 = sbr.rel (%p95) target = $region20
        $region19: #{tpu_custom_call.1} parent=15 // pred_region
          %s98 = sand.u32 %s34, 1
          %s99 = scalar_lea.sflag [#allocation3], %s98
          %s100 = sand.u32 %s34, 1
          %s101 = smul.addr %s100, 32
          %s102 = scalar_lea.vmem [#allocation2], %s101
          %s103 = smul.u32 2, %s18
          %s105 = ssub.s32 512, 512
          %106 = vsyncadd %s99, %s105
          %s107 = smul.addr %s17, 4
          %s108 = sadd.s32 %s103, %s107
          %s109 = smul.addr %s108, 128
          %s110 = scalar_lea.hbm %s0, %s109
          %s111 = sshll.u32 %s102, 4
          %s112 = int_to_ptr.vmem [resolvable:$true] %s111
          %117 = dma.hbm_to_vmem [thread:$0]  %s110, 512, %s112, %s99, 256, 256, 16
        $region20: #{tpu_custom_call.1} parent=15 // pred_fallthru
          _
      $region16: #{tpu_custom_call.1} parent=5 // pred_fallthru
        _
      %p118 = scmp.le.s32.totalorder 1, %s10
      %p119 = scmp.lt.s32.totalorder %s10, 3
      %p120 = pnand %p118, %p119
      %p121 = pneg %p120
      // Predicated region
      $region21: #{tpu_custom_call.1} parent=5 // pred_check
        _
      $region22: #{tpu_custom_call.1} parent=5 // pred_check_branch
        %123 = sbr.rel (%p120) target = $region24
      $region23: #{tpu_custom_call.1} parent=5 // pred_region
        %s124 = ssub.s32 %s10, 1
        %s125 = sand.u32 %s37, 1
        %s126 = scalar_lea.sflag [#allocation3], %s125
        %s127 = sand.u32 %s37, 1
        %s128 = smul.addr %s127, 32
        %s129 = scalar_lea.vmem [#allocation2], %s128
        // Predicated region
        $region25: #{tpu_custom_call.1} parent=23 // pred_check
          %p130 = pneg %p50
        $region26: #{tpu_custom_call.1} parent=23 // pred_check_branch
          %132 = sbr.rel (%p130) target = $region28
        $region27: #{tpu_custom_call.1} parent=23 // pred_region
          %133 = dma.done %s126, 512
        $region28: #{tpu_custom_call.1} parent=23 // pred_fallthru
          _
        %s134 = sand.u32 %s37, 1
        %s135 = scalar_lea.sflag [#allocation3], %s134
        %s136 = sand.u32 %s37, 1
        %s137 = smul.addr %s136, 32
        %s138 = scalar_lea.vmem [#allocation2], %s137
        %p139 = pneg %p50
        %p140 = pneg %p47
        %p141 = pneg %p76
        %p142 = pneg %p73
        %p143 = scmp.lt.s32.totalorder %s19, 1
        %s144 = scalar_select %p143, %s19, 1
        %s145 = smul.addr %s144, 2
        %s146 = smul.addr %s145, 8
        %s147 = scalar_lea.vmem %s1, %s146
        %s148 = smul.u32 2, %s20
        %p149 = scmp.lt.s32.totalorder %s19, 1
        %s150 = scalar_select %p149, %s19, 1
        %s151 = smul.addr %s150, 2
        %s152 = smul.addr %s151, 8
        %s153 = scalar_lea.vmem %s1, %s152
        %p154 = scmp.eq.s32.totalorder %s20, 0
        // Predicated region
        $region29: #{tpu_custom_call.1} parent=23 // pred_check
          %p155 = pneg %p154
        $region30: #{tpu_custom_call.1} parent=23 // pred_check_branch
          %157 = sbr.rel (%p155) target = $region32
        $region31: #{tpu_custom_call.1} parent=23 // pred_region
          %vm158 = vcmask 7168
          %159 = vst.msk [vmem:[%s153] sm:$0xff] %vm158, 0.0
          %160 = vst.msk [vmem:[%s153 + $0x8] sm:$0xff] %vm158, 0.0
        $region32: #{tpu_custom_call.1} parent=23 // pred_fallthru
          _
        %v161 = vld [vmem:[%s129] sm:$0xff]
        %v162 = vld [vmem:[%s129 + $0x8] sm:$0xff]
        %v163 = vld [vmem:[%s129 + $0x10] sm:$0xff]
        %v164 = vld [vmem:[%s129 + $0x18] sm:$0xff]
        %v165 = vld [vmem:[%s153] sm:$0xff]
        %v166 = vld [vmem:[%s153 + $0x8] sm:$0xff]
        %v167 = vadd.f32 %v161, %v162
        %168 = vadd.xlane.f32.xlu0 %v167
        %v169 = vpop.xlane.xlu0 %168
        %v170 = vadd.f32 %v163, %v164
        %171 = vadd.xlane.f32.xlu0 %v170
        %v172 = vpop.xlane.xlu0 %171
        %v173 = vadd.f32 %v165, %v169
        %v174 = vadd.f32 %v166, %v172
        %vm175 = vcmask 7168
        %176 = vst.msk [vmem:[%s153] sm:$0xff] %vm175, %v173
        %177 = vst.msk [vmem:[%s153 + $0x8] sm:$0xff] %vm175, %v174
        // Predicated region
        $region33: #{tpu_custom_call.1} parent=23 // pred_check
          %p178 = pneg %p154
        $region34: #{tpu_custom_call.1} parent=23 // pred_check_branch
          %180 = sbr.rel (%p178) target = $region36
        $region35: #{tpu_custom_call.1} parent=23 // pred_region
          %v181 = vld [vmem:[%s153] sm:$0xff]
          %v182 = vld [vmem:[%s153 + $0x8] sm:$0xff]
          %v183 = vmul.f32 %v181, 0.00390625
          %v184 = vmul.f32 %v182, 0.00390625
          %185 = vst.msk [vmem:[%s153] sm:$0xff] %vm175, %v183
          %186 = vst.msk [vmem:[%s153 + $0x8] sm:$0xff] %vm175, %v184
        $region36: #{tpu_custom_call.1} parent=23 // pred_fallthru
          _
        %p187 = scmp.lt.s32.totalorder %s19, 1
        %s188 = scalar_select %p187, %s19, 1
        %s189 = smul.addr %s188, 2
        %s190 = smul.addr %s189, 8
        %s191 = scalar_lea.vmem %s1, %s190
        // Predicated region
        $region37: #{tpu_custom_call.1} parent=23 // pred_check
          %p192 = pneg %p73
        $region38: #{tpu_custom_call.1} parent=23 // pred_check_branch
          %194 = sbr.rel (%p192) target = $region40
        $region39: #{tpu_custom_call.1} parent=23 // pred_region
          _
        $region40: #{tpu_custom_call.1} parent=23 // pred_fallthru
          _
      $region24: #{tpu_custom_call.1} parent=5 // pred_fallthru
        _
      %p195 = scmp.le.s32.totalorder 2, %s10
      // Predicated region
      $region41: #{tpu_custom_call.1} parent=5 // pred_check
        %p196 = pneg %p195
      $region42: #{tpu_custom_call.1} parent=5 // pred_check_branch
        %198 = sbr.rel (%p196) target = $region44
      $region43: #{tpu_custom_call.1} parent=5 // pred_region
        %s199 = ssub.s32 %s10, 2
        // Predicated region
        $region45: #{tpu_custom_call.1} parent=43 // pred_check
          %p200 = pneg %p79
        $region46: #{tpu_custom_call.1} parent=43 // pred_check_branch
          %202 = sbr.rel (%p200) target = $region48
        $region47: #{tpu_custom_call.1} parent=43 // pred_region
          %p203 = scmp.lt.s32.totalorder %s21, 1
          %s204 = scalar_select %p203, %s21, 1
          %s205 = smul.addr %s204, 2
          %s206 = smul.addr %s205, 8
          %s207 = scalar_lea.vmem %s1, %s206
        $region48: #{tpu_custom_call.1} parent=43 // pred_fallthru
          _
      $region44: #{tpu_custom_call.1} parent=5 // pred_fallthru
        _
    $region6: #{tpu_custom_call.1} parent=1 // loop_footer
      %s14 = sadd.s32 1, %s10
    $region7: #{tpu_custom_call.1} parent=1 // loop_footer_branch
      %9 = sbr.rel target = $region3
    $region8: #{tpu_custom_call.1} parent=1 // loop_exit
      _
    %208 = vsyncpa [#allocation3], 1
    %s209 = scalar_lea.sflag [#allocation3], 1
    %210 = vsyncpa %s209, 1

</llo_original>
